<compile_context>
chip_gen: v6e
topology: v6e:2x2x1
jax: 0.10.0
libtpu: 0.0.40
codegen_flags: <defaults>
</compile_context>

<pallas_src>
import functools

import jax
import jax.numpy as jnp
from jax.experimental import pallas as pl
from jax.experimental.pallas import tpu as pltpu


def _round_up(x, m):
    return (x + m - 1) // m * m


@functools.lru_cache(maxsize=1)
def _vmem_budgets():
    """(vmem_limit_bytes, tile_budget_bytes) for the current chip generation."""
    try:
        cap = int(pltpu.get_tpu_info().vmem_capacity_bytes)
    except Exception:                       # pragma: no cover - conservative fallback
        cap = 64 * 1024 * 1024
    if cap >= 100 * 1024 * 1024:            # v5e / v6e: 128 MiB physical VMEM
        return 96 * 1024 * 1024, 64 * 1024 * 1024
    return 40 * 1024 * 1024, 22 * 1024 * 1024   # v7x: 64 MiB physical VMEM


def _pick_tb(n_rows, n_classes, in_itemsize, tile_budget):
    """Batch-tile rows sized against the VMEM budget."""
    sub = 16 if in_itemsize < 4 else 8            # bf16 packs 16 rows per vreg
    c_lanes = _round_up(n_classes, 128)           # lane-padded width in VMEM
    # double-buffered input tile + ~6 f32-width (tb, C) temporaries
    # (f32 upcast, z, exp(z), iota, coeff, product)
    bytes_per_row = 2 * c_lanes * in_itemsize + 6 * c_lanes * 4
    tb = tile_budget // bytes_per_row
    # keep >= ~8 grid steps so the "parallel" axis can shard across v7x's 2 TCs
    tb = min(tb, 1024, _round_up(pl.cdiv(n_rows, 8), sub))
    tb = max(sub, (tb // sub) * sub)
    tb = min(tb, _round_up(n_rows, sub))
    return int(tb)


def _ls_ce_kernel(pred_ref, target_ref, weight_ref, out_ref, *, confidence, off):
    x = pred_ref[...].astype(jnp.float32)       # (TB, C)  bf16 inputs upcast here
    t = target_ref[...]                         # (TB, 1)  int32
    w = weight_ref[...].astype(jnp.float32)     # (1, C)

    # numerically stable log_softmax over the class (lane) dim
    m = jnp.max(x, axis=-1, keepdims=True)
    z = x - m
    lse = jnp.log(jnp.sum(jnp.exp(z), axis=-1, keepdims=True))
    logp = z - lse                              # (TB, C)

    # folded smoothed-target CE: one fused cross-lane reduction
    #   coeff[c] = confidence*w[c] at the target class, off*w[c] elsewhere
    col = jax.lax.broadcasted_iota(jnp.int32, x.shape, 1)          # (TB, C)
    coeff = jnp.where(col == t, confidence * w, off * w)           # (TB, C)
    out_ref[...] = -jnp.sum(coeff * logp, axis=-1, keepdims=True)  # per-row loss


def label_smoothing_ce_loss(pred, target, weight, *, smoothing=0.1, tb=None):
    """pred: (N, C) float (f32 or bf16), target: (N,) int, weight: (C,) -> scalar f32."""
    N, C = pred.shape
    vmem_limit, tile_budget = _vmem_budgets()
    if tb is None:
        tb = _pick_tb(N, C, pred.dtype.itemsize, tile_budget)

    target2 = target.astype(jnp.int32).reshape(N, 1)
    weight2 = weight.astype(jnp.float32).reshape(1, C)

    confidence = 1.0 - float(smoothing)
    off = float(smoothing) / (C - 1) if C > 1 else 0.0   # guard the C==1 degenerate case

    kernel = functools.partial(_ls_ce_kernel, confidence=confidence, off=off)

    row_losses = pl.pallas_call(
        kernel,
        out_shape=jax.ShapeDtypeStruct((N, 1), jnp.float32),
        grid_spec=pltpu.PrefetchScalarGridSpec(
            num_scalar_prefetch=0,
            grid=(pl.cdiv(N, tb),),
            in_specs=[
                pl.BlockSpec((tb, C), lambda i: (i, 0)),   # pred tile (full class dim)
                pl.BlockSpec((tb, 1), lambda i: (i, 0)),   # target tile
                pl.BlockSpec((1, C), lambda i: (0, 0)),    # class weights (resident)
            ],
            out_specs=pl.BlockSpec((tb, 1), lambda i: (i, 0)),  # per-row losses
        ),
        compiler_params=pltpu.CompilerParams(
            dimension_semantics=("parallel",),             # independent batch tiles
            vmem_limit_bytes=vmem_limit),
    )(pred, target2, weight2)

    # Final reduce in the wrapper; ragged-tail rows are never written, output is (N, 1).
    return jnp.sum(row_losses[:, 0]) / jnp.float32(N)


def _reference(pred, target, weight, smoothing):
    pred = pred.astype(jnp.float32)
    N, C = pred.shape
    logp = jax.nn.log_softmax(pred, axis=-1)
    true_dist = jnp.full((N, C), smoothing / (C - 1), dtype=jnp.float32)
    true_dist = true_dist.at[jnp.arange(N), target].set(1.0 - smoothing)
    return jnp.mean(jnp.sum(-true_dist * logp * weight[None, :].astype(jnp.float32),
                            axis=-1))


if __name__ == "__main__":
    smoothing = 0.1
    key = jax.random.PRNGKey(0)
    k_pred, k_tgt, k_w, k_pred2, k_tgt2 = jax.random.split(key, 5)

    # Test 1: f32, C = 32 (class block == full array dim, ragged lane reduction).
    N, C = 8, 32
    pred = jax.random.normal(k_pred, (N, C), dtype=jnp.float32)
    target = jax.random.randint(k_tgt, (N,), 0, C, dtype=jnp.int32)
    weight = 0.5 + jax.random.uniform(k_w, (C,), dtype=jnp.float32)

    loss = jax.block_until_ready(
        label_smoothing_ce_loss(pred, target, weight, smoothing=smoothing))
    ref = _reference(pred, target, weight, smoothing)
    assert jnp.allclose(loss, ref, rtol=1e-5, atol=1e-6), (loss, ref)

    # Test 2: bf16 logits, N = 10 (ragged batch tail, bf16 sublane rounding).
    N2 = 10
    pred2 = jax.random.normal(k_pred2, (N2, C), dtype=jnp.float32).astype(jnp.bfloat16)
    target2 = jax.random.randint(k_tgt2, (N2,), 0, C, dtype=jnp.int32)

    loss2 = jax.block_until_ready(
        label_smoothing_ce_loss(pred2, target2, weight, smoothing=smoothing))
    ref2 = _reference(pred2, target2, weight, smoothing)
    assert jnp.allclose(loss2, ref2, rtol=1e-5, atol=1e-6), (loss2, ref2)

    print("KERNEL_OK")
</pallas_src>

<mosaic_0001>
module attributes {stable_mosaic.version = 11 : i64} {
  func.func @_ls_ce_kernel(%arg0: i32, %arg1: memref<8x32xf32, #tpu.memory_space<vmem>>, %arg2: memref<8x1xi32, #tpu.memory_space<vmem>>, %arg3: memref<1x32xf32, #tpu.memory_space<vmem>>, %arg4: memref<8x1xf32, #tpu.memory_space<vmem>>) attributes {dimension_semantics = [#tpu.dimension_semantics<parallel>], iteration_bounds = array<i64: 1>, scalar_prefetch = 0 : i64, scratch_operands = 0 : i64, tpu.core_type = #tpu.core_type<tc>, window_params = [{transform_indices = @transform_0, window_bounds = array<i64: 8, 32>}, {transform_indices = @transform_1, window_bounds = array<i64: 8, 1>}, {pipeline_mode = #tpu.pipeline_mode<synchronous>, transform_indices = @transform_2, window_bounds = array<i64: 1, 32>}, {transform_indices = @transform_3, window_bounds = array<i64: 8, 1>}]} {
    %c0 = arith.constant 0 : index
    %c0_0 = arith.constant 0 : index
    %0 = vector.load %arg1[%c0, %c0_0] : memref<8x32xf32, #tpu.memory_space<vmem>>, vector<8x32xf32>
    %c0_1 = arith.constant 0 : index
    %c0_2 = arith.constant 0 : index
    %1 = vector.load %arg2[%c0_1, %c0_2] : memref<8x1xi32, #tpu.memory_space<vmem>>, vector<8x1xi32>
    %c0_3 = arith.constant 0 : index
    %c0_4 = arith.constant 0 : index
    %2 = vector.load %arg3[%c0_3, %c0_4] : memref<1x32xf32, #tpu.memory_space<vmem>>, vector<1x32xf32>
    %cst = arith.constant dense<0xFF800000> : vector<8xf32>
    %3 = vector.multi_reduction <maximumf>, %0, %cst [1] : vector<8x32xf32> to vector<8xf32>
    %4 = vector.shape_cast %3 : vector<8xf32> to vector<8x1xf32>
    %5 = vector.broadcast %4 : vector<8x1xf32> to vector<8x32xf32>
    %6 = arith.subf %0, %5 : vector<8x32xf32>
    %7 = math.exp %6 : vector<8x32xf32>
    %cst_5 = arith.constant dense<0.000000e+00> : vector<8xf32>
    %8 = vector.multi_reduction <add>, %7, %cst_5 [1] : vector<8x32xf32> to vector<8xf32>
    %9 = vector.shape_cast %8 : vector<8xf32> to vector<8x1xf32>
    %10 = math.log %9 : vector<8x1xf32>
    %11 = vector.broadcast %10 : vector<8x1xf32> to vector<8x32xf32>
    %12 = arith.subf %6, %11 : vector<8x32xf32>
    %13 = tpu.iota {dimensions = array<i32: 1>} : vector<8x32xi32>
    %14 = vector.broadcast %1 : vector<8x1xi32> to vector<8x32xi32>
    %15 = arith.cmpi eq, %13, %14 : vector<8x32xi32>
    %cst_6 = arith.constant 0.899999976 : f32
    %16 = vector.broadcast %cst_6 : f32 to vector<1x32xf32>
    %17 = arith.mulf %16, %2 : vector<1x32xf32>
    %cst_7 = arith.constant 0.0032258064 : f32
    %18 = vector.broadcast %cst_7 : f32 to vector<1x32xf32>
    %19 = arith.mulf %18, %2 : vector<1x32xf32>
    %20 = vector.shape_cast %17 : vector<1x32xf32> to vector<1x32xf32>
    %21 = vector.broadcast %20 : vector<1x32xf32> to vector<8x32xf32>
    %22 = vector.shape_cast %19 : vector<1x32xf32> to vector<1x32xf32>
    %23 = vector.broadcast %22 : vector<1x32xf32> to vector<8x32xf32>
    %24 = arith.select %15, %21, %23 : vector<8x32xi1>, vector<8x32xf32>
    %25 = arith.mulf %24, %12 : vector<8x32xf32>
    %cst_8 = arith.constant dense<0.000000e+00> : vector<8xf32>
    %26 = vector.multi_reduction <add>, %25, %cst_8 [1] : vector<8x32xf32> to vector<8xf32>
    %27 = vector.shape_cast %26 : vector<8xf32> to vector<8x1xf32>
    %cst_9 = arith.constant 0.000000e+00 : f32
    %28 = vector.broadcast %cst_9 : f32 to vector<8x1xf32>
    %29 = arith.subf %28, %27 : vector<8x1xf32>
    %c0_10 = arith.constant 0 : index
    %c0_11 = arith.constant 0 : index
    %30 = vector.load %arg4[%c0_10, %c0_11] : memref<8x1xf32, #tpu.memory_space<vmem>>, vector<8x1xf32>
    tpu.vector_store %arg4[%c0_10, %c0_11], %29 {strides = array<i32>} : memref<8x1xf32, #tpu.memory_space<vmem>>, vector<8x1xf32>,
    return
  }
  func.func @transform_0(%arg0: i32) -> (i32, i32) {
    %c0_i32 = arith.constant 0 : i32
    %c0_i32_0 = arith.constant 0 : i32
    return %arg0, %c0_i32 : i32, i32
  }
  func.func @transform_1(%arg0: i32) -> (i32, i32) {
    %c0_i32 = arith.constant 0 : i32
    %c0_i32_0 = arith.constant 0 : i32
    return %arg0, %c0_i32 : i32, i32
  }
  func.func @transform_2(%arg0: i32) -> (i32, i32) {
    %c0_i32 = arith.constant 0 : i32
    %c0_i32_0 = arith.constant 0 : i32
    %c0_i32_1 = arith.constant 0 : i32
    return %c0_i32, %c0_i32_0 : i32, i32
  }
  func.func @transform_3(%arg0: i32) -> (i32, i32) {
    %c0_i32 = arith.constant 0 : i32
    %c0_i32_0 = arith.constant 0 : i32
    return %arg0, %c0_i32 : i32, i32
  }
}

</mosaic_0001>

<llo_original>
// kernel: tpu_custom_call.1
$region0: #{tpu_custom_call.1}
  #allocation0 [shape = 'u32[]', space=smem, size = 0x4, offset = 0x4, fixed_abs, tag = 'smem constant byte address 0x4 - core index']
  #allocation1 [shape = 'u32[144,128]{1,0:T(1,128)}', space=vmem, size = 0x12000, scoped, tag = 'internal scratch']
  %s0 = inlined_call_operand.vmem [shape: f32[8,32], index: 0, kind: input, shape index: {}]
  %s1 = inlined_call_operand.vmem [shape: s32[8,1], index: 1, kind: input, shape index: {}]
  %s2 = inlined_call_operand.vmem [shape: f32[1,32], index: 2, kind: input, shape index: {}]
  %s3 = inlined_call_operand.vmem [shape: f32[8,1], index: 3, kind: output, shape index: {}]
  %s4 = sld [smem:[#allocation0]]
  $region22: #{tpu_custom_call.1} parent=0
    _
  %s6 = ssub.s32 1, %s4
  %s7 = scalar_select 0, %s6, %s4
  // Predicated region
  $region2: #{tpu_custom_call.1} parent=0 // pred_check
    _
  $region3: #{tpu_custom_call.1} parent=0 // pred_check_branch
    %9 = sbr.rel (0) target = $region5
  $region4: #{tpu_custom_call.1} parent=0 // pred_region
    _
  $region5: #{tpu_custom_call.1} parent=0 // pred_fallthru
    _
  // Predicated region
  $region6: #{tpu_custom_call.1} parent=0 // pred_check
    _
  $region7: #{tpu_custom_call.1} parent=0 // pred_check_branch
    %11 = sbr.rel (0) target = $region9
  $region8: #{tpu_custom_call.1} parent=0 // pred_region
    _
  $region9: #{tpu_custom_call.1} parent=0 // pred_fallthru
    _
  // Predicated region
  $region10: #{tpu_custom_call.1} parent=0 // pred_check
    _
  $region11: #{tpu_custom_call.1} parent=0 // pred_check_branch
    %13 = sbr.rel (0) target = $region13
  $region12: #{tpu_custom_call.1} parent=0 // pred_region
    _
  $region13: #{tpu_custom_call.1} parent=0 // pred_fallthru
    _
  %v14 = vld [vmem:[%s0] sm:$0xff]
  %v15 = vld [vmem:[%s1] sm:$0xff]
  %v16 = vld [vmem:[%s2] sm:$0x1]
  %vm17 = vcmask 261120
  %v18 = vsel %vm17, %v14, -inf
  %19 = vmax.xlane.f32.xlu0 %v18
  %v20 = vpop.xlane.xlu0 %19
  %v21 = vsub.f32 %v14, %v20
  %v22 = vmul.f32 %v21, 1.442695
  %v23 = vpow.pop %v22
  %v24 = vsel %vm17, %v23, 0.0
  %25 = vadd.xlane.f32.xlu0 %v24
  %v26 = vpop.xlane.xlu0 %25
  %v27 = vlog2.pop %v26
  %v28 = vmul.f32 %v27, 0.6931472
  %v29 = vsub.f32 %v21, %v28
  %v30 = vlaneseq
  %v31 = vand.u32 %v30, 127
  %32 = vset.pattern.permute.xlu0 0
  %33 = vperm.xlu0 %32, %v15
  %v34 = vpop.permute.xlu0 %33
  %vm35 = vcmp.eq.s32.totalorder %v31, %v34
  %v36 = vmul.f32 %v16, 0.9
  %v37 = vmul.f32 %v16, 0.0032258064
  %v39 = vlaneseq
  %v40 = vshrl.u32 %v39, 7
  %v41 = vsub.s32 0, %v40
  %v42 = vrot.slane %v36, %v41
  %v45 = vlaneseq
  %v46 = vshrl.u32 %v45, 7
  %v47 = vsub.s32 0, %v46
  %v48 = vrot.slane %v37, %v47
  %v50 = vsel %vm35, %v42, %v48
  %v51 = vmul.f32 %v50, %v29
  %v52 = vsel %vm17, %v51, 0.0
  %53 = vadd.xlane.f32.xlu0 %v52
  %v54 = vpop.xlane.xlu0 %53
  %v55 = vsub.f32 0.0, %v54
  %vm56 = vcmask 7168
  %57 = vst.msk [vmem:[%s3] sm:$0xff] %vm56, %v55
  // Predicated region
  $region14: #{tpu_custom_call.1} parent=0 // pred_check
    _
  $region15: #{tpu_custom_call.1} parent=0 // pred_check_branch
    %59 = sbr.rel (0) target = $region17
  $region16: #{tpu_custom_call.1} parent=0 // pred_region
    _
  $region17: #{tpu_custom_call.1} parent=0 // pred_fallthru
    _
  // Predicated region
  $region18: #{tpu_custom_call.1} parent=0 // pred_check
    _
  $region19: #{tpu_custom_call.1} parent=0 // pred_check_branch
    %61 = sbr.rel (0) target = $region21
  $region20: #{tpu_custom_call.1} parent=0 // pred_region
    _
  $region21: #{tpu_custom_call.1} parent=0 // pred_fallthru
    _

</llo_original>
